<compile_context>
chip_gen: v7x
topology: tpu7x:2x2x1
jax: 0.10.0
libtpu: 0.0.40
codegen_flags: <defaults>
</compile_context>

<pallas_src>
import functools
import math

import jax
import jax.numpy as jnp
from jax.experimental import pallas as pl
from jax.experimental.pallas import tpu as pltpu


_VMEM_LIMIT = 32 * 1024 * 1024  # safe scoped budget on v5e/v6e/v7x
# TODO(synk): per-generation vmem_limit (raise toward 64-96 MiB on v5e/v6e) via
# pltpu.get_tpu_info() if larger tiles are ever needed.


def _pick_tile(dim, pref, base):
    """Largest tile <= pref that is a multiple of `base` and divides `dim`
    (falls back to the full dimension)."""
    if dim <= pref:
        return dim
    t = (pref // base) * base
    while t >= base:
        if dim % t == 0:
            return t
        t -= base
    return dim


def _pick_head_block(H, D, L, tkv, score_budget=4 * 1024 * 1024):
    """Head block hb dividing H such that the (1, L, hb*D) lane-axis BlockSpec
    is legal (hb*D % 128 == 0 or hb == H) and the f32 score tile stays small."""
    valid = [hb for hb in range(1, H + 1)
             if H % hb == 0 and (hb == H or (hb * D) % 128 == 0)]
    under = [hb for hb in valid if hb * L * tkv * 4 <= score_budget]
    return max(under) if under else min(valid)


# ---------------------------------------------------------------------------
# Kernel 1: fused LoRA + packed QKV in-projection (weight-resident, bf16 MXU)
#   y   = x + (x @ A_p) @ B_p
#   out = y @ W_p^T + b_p          for p in {q, k, v}
# ---------------------------------------------------------------------------
def _lora_proj_kernel(x_ref, a_ref, b_ref, wt_ref, bias_ref, o_ref):
    # x_ref: (tm, E) f32   a_ref: (1, E, r) bf16   b_ref: (1, r, E) bf16
    # wt_ref: (1, E, E) bf16   bias_ref: (1, 1, E) f32   o_ref: (1, tm, E) bf16
    x = x_ref[...]                                               # f32 residual
    xb = x.astype(jnp.bfloat16)
    lo = jnp.dot(xb, a_ref[0], preferred_element_type=jnp.float32)        # (tm, r)
    y = x + jnp.dot(lo.astype(jnp.bfloat16), b_ref[0],
                    preferred_element_type=jnp.float32)                   # (tm, E)
    out = jnp.dot(y.astype(jnp.bfloat16), wt_ref[0],
                  preferred_element_type=jnp.float32) + bias_ref[0]       # (tm, E)
    o_ref[0] = out.astype(o_ref.dtype)                                    # bf16 store


def lora_qkv_proj(x, a_s, b_s, wt_s, b_in_s, *, tm_pref=512):
    """x: (M, E) activation rows (batch-major). Params stacked along leading
    axis P (3 for fused Q/K/V self-attention, 1 for a single projection).
    Returns (P, M, E) bf16. Full output width per step (weight-resident)."""
    M, E = x.shape
    P, _, r = a_s.shape
    tm = _pick_tile(M, tm_pref, 8)
    grid = (M // tm, P)   # P innermost -> x tile stays resident across q/k/v
    # TODO(synk): for very large E (> ~2048) reintroduce a column-tile axis with
    # a resident y = x + x@A@B VMEM scratch computed under pl.when(j == 0).
    return pl.pallas_call(
        _lora_proj_kernel,
        out_shape=jax.ShapeDtypeStruct((P, M, E), jnp.bfloat16),
        grid=grid,
        in_specs=[
            pl.BlockSpec((tm, E), lambda i, p: (i, 0)),
            pl.BlockSpec((1, E, r), lambda i, p: (p, 0, 0)),
            pl.BlockSpec((1, r, E), lambda i, p: (p, 0, 0)),
            pl.BlockSpec((1, E, E), lambda i, p: (p, 0, 0)),
            pl.BlockSpec((1, 1, E), lambda i, p: (p, 0, 0)),
        ],
        out_specs=pl.BlockSpec((1, tm, E), lambda i, p: (p, i, 0)),
        compiler_params=pltpu.CompilerParams(
            dimension_semantics=("parallel", "arbitrary"),
            vmem_limit_bytes=_VMEM_LIMIT),
    )(x, a_s, b_s, wt_s, b_in_s)


# ---------------------------------------------------------------------------
# Kernel 2: flash-style multi-head attention (head-blocked, kv-tiled,
# online softmax with VMEM accumulators).
# ---------------------------------------------------------------------------
def _mha_flash_kernel(hb, D, q_ref, k_ref, v_ref, o_ref, m_sc, l_sc, acc_sc):
    # q_ref: (1, L, hb*D) bf16   k_ref/v_ref: (1, tkv, hb*D) bf16
    # o_ref: (1, L, hb*D) bf16
    # m_sc/l_sc: (hb, L, 1) f32   acc_sc: (hb, L, D) f32
    kv = pl.program_id(2)

    @pl.when(kv == 0)
    def _():
        m_sc[...] = jnp.full_like(m_sc, -jnp.inf)
        l_sc[...] = jnp.zeros_like(l_sc)
        acc_sc[...] = jnp.zeros_like(acc_sc)

    L = q_ref.shape[1]
    tkv = k_ref.shape[1]
    q = q_ref[0].reshape(L, hb, D)       # 1/sqrt(D) already folded into W_q
    k = k_ref[0].reshape(tkv, hb, D)
    v = v_ref[0].reshape(tkv, hb, D)

    s = jnp.einsum("lhd,shd->hls", q, k,
                   preferred_element_type=jnp.float32)           # (hb, L, tkv)
    m_prev = m_sc[...]
    m_new = jnp.maximum(m_prev, jnp.max(s, axis=-1, keepdims=True))
    alpha = jnp.exp(m_prev - m_new)
    # TODO(synk): on v6e/v7x the exp can be computed in bf16 to halve EUP work;
    # kept f32 for portability (v5e has no bf16 EUP) and tighter accuracy.
    p = jnp.exp(s - m_new)
    l_sc[...] = alpha * l_sc[...] + jnp.sum(p, axis=-1, keepdims=True)
    acc_sc[...] = alpha * acc_sc[...] + jnp.einsum(
        "hls,shd->hld", p.astype(jnp.bfloat16), v,
        preferred_element_type=jnp.float32)                      # (hb, L, D)
    m_sc[...] = m_new

    @pl.when(kv == pl.num_programs(2) - 1)
    def _():
        # Deferred softmax normalization on the (hb, L, D) accumulator; single
        # per-(n, head-block) relayout to the lane-dense (L, hb*D) output slab.
        o = acc_sc[...] * pl.reciprocal(l_sc[...], approx=True)
        o = o.astype(o_ref.dtype)
        o_ref[0] = jnp.swapaxes(o, 0, 1).reshape(L, hb * D)
        # TODO(synk): attention-prob dropout is identity in eval mode; not applied.


def mha_core(qh, kh, vh, *, num_heads):
    """qh: (N, L, E) bf16; kh, vh: (N, S, E) bf16 -> (N, L, E) bf16."""
    N, L, E = qh.shape
    S = kh.shape[1]
    H = num_heads
    D = E // H
    tkv = _pick_tile(S, 256, 8)
    hb = _pick_head_block(H, D, L, tkv)
    hd = hb * D
    grid = (N, H // hb, S // tkv)
    # TODO(synk): attention_mask=None path only; masked attention would add a
    # mask tile input and a jnp.where before the online-softmax update.
    kernel = functools.partial(_mha_flash_kernel, hb, D)
    return pl.pallas_call(
        kernel,
        out_shape=jax.ShapeDtypeStruct((N, L, E), jnp.bfloat16),
        grid=grid,
        in_specs=[
            pl.BlockSpec((1, L, hd), lambda n, h, kv: (n, 0, h)),
            pl.BlockSpec((1, tkv, hd), lambda n, h, kv: (n, kv, h)),
            pl.BlockSpec((1, tkv, hd), lambda n, h, kv: (n, kv, h)),
        ],
        out_specs=pl.BlockSpec((1, L, hd), lambda n, h, kv: (n, 0, h)),
        scratch_shapes=[
            pltpu.VMEM((hb, L, 1), jnp.float32),   # running max
            pltpu.VMEM((hb, L, 1), jnp.float32),   # running denom
            pltpu.VMEM((hb, L, D), jnp.float32),   # output accumulator
        ],
        compiler_params=pltpu.CompilerParams(
            dimension_semantics=("parallel", "parallel", "arbitrary"),
            vmem_limit_bytes=_VMEM_LIMIT),
    )(qh, kh, vh)


# ---------------------------------------------------------------------------
# Kernel 3: output projection  out = x @ Wo^T + bo   (weight-resident)
# ---------------------------------------------------------------------------
def _linear_kernel(x_ref, wt_ref, bias_ref, o_ref):
    o_ref[...] = (jnp.dot(x_ref[...], wt_ref[...],
                          preferred_element_type=jnp.float32)
                  + bias_ref[...]).astype(o_ref.dtype)


def linear(x, wt, bias2, *, tm_pref=512):
    """x: (M, E) bf16. wt: (E, N_out) bf16 pre-transposed. bias2: (1, N_out) f32."""
    M, E = x.shape
    n_out = wt.shape[1]
    tm = _pick_tile(M, tm_pref, 8)
    return pl.pallas_call(
        _linear_kernel,
        out_shape=jax.ShapeDtypeStruct((M, n_out), jnp.float32),
        grid=(M // tm,),
        in_specs=[
            pl.BlockSpec((tm, E), lambda i: (i, 0)),
            pl.BlockSpec((E, n_out), lambda i: (0, 0)),
            pl.BlockSpec((1, n_out), lambda i: (0, 0)),
        ],
        out_specs=pl.BlockSpec((tm, n_out), lambda i: (i, 0)),
        compiler_params=pltpu.CompilerParams(
            dimension_semantics=("parallel",),
            vmem_limit_bytes=_VMEM_LIMIT),
    )(x, wt, bias2)


# ---------------------------------------------------------------------------
# Parameter packing (one-time: transposes, QKV stacking, scale fold, bf16 cast)
# ---------------------------------------------------------------------------
def init_params(key, hidden_size, num_heads, rank):
    ks = jax.random.split(key, 10)
    E = hidden_size
    return {
        "num_heads": num_heads,
        "lora_q_A": jax.random.normal(ks[0], (E, rank), jnp.float32),
        "lora_q_B": jax.random.normal(ks[1], (rank, E), jnp.float32),
        "lora_k_A": jax.random.normal(ks[2], (E, rank), jnp.float32),
        "lora_k_B": jax.random.normal(ks[3], (rank, E), jnp.float32),
        "lora_v_A": jax.random.normal(ks[4], (E, rank), jnp.float32),
        "lora_v_B": jax.random.normal(ks[5], (rank, E), jnp.float32),
        # nn.MultiheadAttention packed in-projection and out-projection (torch layout)
        "in_proj_weight": 0.05 * jax.random.normal(ks[6], (3 * E, E), jnp.float32),
        "in_proj_bias": 0.05 * jax.random.normal(ks[7], (3 * E,), jnp.float32),
        "out_proj_weight": 0.05 * jax.random.normal(ks[8], (E, E), jnp.float32),
        "out_proj_bias": 0.05 * jax.random.normal(ks[9], (E,), jnp.float32),
    }


def pack_params(params):
    E = params["in_proj_weight"].shape[1]
    H = params["num_heads"]
    D = E // H
    scale = 1.0 / math.sqrt(D)
    wt_in = jnp.swapaxes(params["in_proj_weight"].reshape(3, E, E), 1, 2)  # W_p^T
    b_in = params["in_proj_bias"].reshape(3, 1, E)
    # Fold the 1/sqrt(head_dim) attention scale into the Q projection (exact),
    # in f32 before the bf16 cast.
    wt_in = wt_in.at[0].multiply(scale)
    b_in = b_in.at[0].multiply(scale)
    return {
        "num_heads": H,
        # Weights stored bf16 (halves HBM streaming + VMEM tile footprint);
        # biases stay f32 (added to f32 accumulators).
        "A": jnp.stack([params["lora_q_A"], params["lora_k_A"],
                        params["lora_v_A"]]).astype(jnp.bfloat16),
        "B": jnp.stack([params["lora_q_B"], params["lora_k_B"],
                        params["lora_v_B"]]).astype(jnp.bfloat16),
        "Wt_in": wt_in.astype(jnp.bfloat16),              # (3, E, E)
        "b_in": b_in,                                      # (3, 1, E) f32
        "Wt_out": params["out_proj_weight"].T.astype(jnp.bfloat16),  # (E, E)
        "b_out": params["out_proj_bias"].reshape(1, E),    # f32
    }


# ---------------------------------------------------------------------------
# Full forward pass (matches LoRABertSelfAttention.forward, attn_mask=None)
# ---------------------------------------------------------------------------
def lora_bert_self_attention(packed, query, key, value):
    L, N, E = query.shape
    S = key.shape[0]
    H = packed["num_heads"]

    shared = (query is key) and (key is value)
    if shared:
        # Self-attention fast path: single fused QKV projection, x read once.
        x = jnp.swapaxes(query, 0, 1).reshape(N * L, E)          # batch-major rows
        qkv = lora_qkv_proj(x, packed["A"], packed["B"],
                            packed["Wt_in"], packed["b_in"])     # (3, N*L, E) bf16
        q2, k2, v2 = qkv[0], qkv[1], qkv[2]
    else:
        outs = []
        for p, t in enumerate((query, key, value)):
            Lp = t.shape[0]
            xp = jnp.swapaxes(t, 0, 1).reshape(N * Lp, E)
            op = lora_qkv_proj(xp, packed["A"][p:p + 1], packed["B"][p:p + 1],
                               packed["Wt_in"][p:p + 1], packed["b_in"][p:p + 1])
            outs.append(op[0])
        q2, k2, v2 = outs

    # Free-view reshape (no HBM relayout): heads stay packed on the lane axis;
    # the attention kernel slices head blocks via its BlockSpec.
    qh = q2.reshape(N, L, E)
    kh = k2.reshape(N, S, E)
    vh = v2.reshape(N, S, E)

    attn = mha_core(qh, kh, vh, num_heads=H)                     # (N, L, E) bf16

    out = linear(attn.reshape(N * L, E), packed["Wt_out"], packed["b_out"])
    return jnp.swapaxes(out.reshape(N, L, E), 0, 1)              # (L, N, E) f32


if __name__ == "__main__":
    # Small config: hidden=32, heads=4 (head_dim=8), seq=8, batch=2, rank=4.
    L, N, E, H, R = 8, 2, 32, 4, 4
    key0 = jax.random.PRNGKey(0)
    kp, kx, kk, kv = jax.random.split(key0, 4)

    params = init_params(kp, hidden_size=E, num_heads=H, rank=R)
    packed = pack_params(params)

    # Self-attention usage (query == key == value) exercises the fused QKV path.
    hidden = 0.1 * jax.random.normal(kx, (L, N, E), jnp.float32)
    out = lora_bert_self_attention(packed, hidden, hidden, hidden)
    out = jax.block_until_ready(out)
    assert out.shape == (L, N, E) and bool(jnp.all(jnp.isfinite(out)))

    # Also exercise the general (distinct q/k/v) path once.
    key_t = 0.1 * jax.random.normal(kk, (L, N, E), jnp.float32)
    value_t = 0.1 * jax.random.normal(kv, (L, N, E), jnp.float32)
    out2 = lora_bert_self_attention(packed, hidden, key_t, value_t)
    out2 = jax.block_until_ready(out2)
    assert out2.shape == (L, N, E) and bool(jnp.all(jnp.isfinite(out2)))

    print("KERNEL_OK")
</pallas_src>

<mosaic_0001>
module attributes {stable_mosaic.version = 11 : i64} {
  func.func @_lora_proj_kernel(%arg0: i32, %arg1: i32, %arg2: memref<16x32xf32, #tpu.memory_space<vmem>>, %arg3: memref<1x32x4xbf16, #tpu.memory_space<vmem>>, %arg4: memref<1x4x32xbf16, #tpu.memory_space<vmem>>, %arg5: memref<1x32x32xbf16, #tpu.memory_space<vmem>>, %arg6: memref<1x1x32xf32, #tpu.memory_space<vmem>>, %arg7: memref<1x16x32xbf16, #tpu.memory_space<vmem>>) attributes {dimension_semantics = [#tpu.dimension_semantics<parallel>, #tpu.dimension_semantics<arbitrary>], iteration_bounds = array<i64: 1, 3>, scalar_prefetch = 0 : i64, scratch_operands = 0 : i64, tpu.core_type = #tpu.core_type<tc>, window_params = [{transform_indices = @transform_0, window_bounds = array<i64: 16, 32>}, {transform_indices = @transform_1, window_bounds = array<i64: 1, 32, 4>}, {transform_indices = @transform_2, window_bounds = array<i64: 1, 4, 32>}, {transform_indices = @transform_3, window_bounds = array<i64: 1, 32, 32>}, {transform_indices = @transform_4, window_bounds = array<i64: 1, 1, 32>}, {transform_indices = @transform_5, window_bounds = array<i64: 1, 16, 32>}]} {
    %c0 = arith.constant 0 : index
    %c0_0 = arith.constant 0 : index
    %0 = vector.load %arg2[%c0, %c0_0] : memref<16x32xf32, #tpu.memory_space<vmem>>, vector<16x32xf32>
    %1 = arith.truncf %0 : vector<16x32xf32> to vector<16x32xbf16>
    %c0_1 = arith.constant 0 : index
    %c0_2 = arith.constant 0 : index
    %c0_3 = arith.constant 0 : index
    %2 = vector.load %arg3[%c0_1, %c0_2, %c0_3] : memref<1x32x4xbf16, #tpu.memory_space<vmem>>, vector<1x32x4xbf16>
    %3 = vector.shape_cast %2 : vector<1x32x4xbf16> to vector<32x4xbf16>
    %cst = arith.constant dense<0.000000e+00> : vector<16x4xf32>
    %4 = tpu.matmul %1, %3, %cst {dimension_numbers = #tpu.dot_dimension_numbers<[1], [0], [0], [1], [0, 0, 1, 1], [], []>} : vector<16x32xbf16>, vector<32x4xbf16>, vector<16x4xf32> -> vector<16x4xf32>
    %5 = arith.truncf %4 : vector<16x4xf32> to vector<16x4xbf16>
    %c0_4 = arith.constant 0 : index
    %c0_5 = arith.constant 0 : index
    %c0_6 = arith.constant 0 : index
    %6 = vector.load %arg4[%c0_4, %c0_5, %c0_6] : memref<1x4x32xbf16, #tpu.memory_space<vmem>>, vector<1x4x32xbf16>
    %7 = vector.shape_cast %6 : vector<1x4x32xbf16> to vector<4x32xbf16>
    %cst_7 = arith.constant dense<0.000000e+00> : vector<16x32xf32>
    %8 = tpu.matmul %5, %7, %cst_7 {dimension_numbers = #tpu.dot_dimension_numbers<[1], [0], [0], [1], [0, 0, 1, 1], [], []>} : vector<16x4xbf16>, vector<4x32xbf16>, vector<16x32xf32> -> vector<16x32xf32>
    %9 = arith.addf %0, %8 : vector<16x32xf32>
    %10 = arith.truncf %9 : vector<16x32xf32> to vector<16x32xbf16>
    %c0_8 = arith.constant 0 : index
    %c0_9 = arith.constant 0 : index
    %c0_10 = arith.constant 0 : index
    %11 = vector.load %arg5[%c0_8, %c0_9, %c0_10] : memref<1x32x32xbf16, #tpu.memory_space<vmem>>, vector<1x32x32xbf16>
    %12 = vector.shape_cast %11 : vector<1x32x32xbf16> to vector<32x32xbf16>
    %cst_11 = arith.constant dense<0.000000e+00> : vector<16x32xf32>
    %13 = tpu.matmul %10, %12, %cst_11 {dimension_numbers = #tpu.dot_dimension_numbers<[1], [0], [0], [1], [0, 0, 1, 1], [], []>} : vector<16x32xbf16>, vector<32x32xbf16>, vector<16x32xf32> -> vector<16x32xf32>
    %c0_12 = arith.constant 0 : index
    %c0_13 = arith.constant 0 : index
    %c0_14 = arith.constant 0 : index
    %14 = vector.load %arg6[%c0_12, %c0_13, %c0_14] : memref<1x1x32xf32, #tpu.memory_space<vmem>>, vector<1x1x32xf32>
    %15 = vector.shape_cast %14 : vector<1x1x32xf32> to vector<1x32xf32>
    %16 = vector.broadcast %15 : vector<1x32xf32> to vector<16x32xf32>
    %17 = arith.addf %13, %16 : vector<16x32xf32>
    %18 = arith.truncf %17 : vector<16x32xf32> to vector<16x32xbf16>
    %c0_15 = arith.constant 0 : index
    %c0_16 = arith.constant 0 : index
    %c0_17 = arith.constant 0 : index
    %19 = vector.load %arg7[%c0_15, %c0_16, %c0_17] : memref<1x16x32xbf16, #tpu.memory_space<vmem>>, vector<1x16x32xbf16>
    %20 = vector.shape_cast %19 : vector<1x16x32xbf16> to vector<16x32xbf16>
    %21 = vector.shape_cast %18 : vector<16x32xbf16> to vector<1x16x32xbf16>
    tpu.vector_store %arg7[%c0_15, %c0_16, %c0_17], %21 {strides = array<i32>} : memref<1x16x32xbf16, #tpu.memory_space<vmem>>, vector<1x16x32xbf16>,
    return
  }
  func.func @transform_0(%arg0: i32, %arg1: i32) -> (i32, i32) {
    %c0_i32 = arith.constant 0 : i32
    %c0_i32_0 = arith.constant 0 : i32
    return %arg0, %c0_i32 : i32, i32
  }
  func.func @transform_1(%arg0: i32, %arg1: i32) -> (i32, i32, i32) {
    %c0_i32 = arith.constant 0 : i32
    %c0_i32_0 = arith.constant 0 : i32
    %c0_i32_1 = arith.constant 0 : i32
    return %arg1, %c0_i32, %c0_i32_0 : i32, i32, i32
  }
  func.func @transform_2(%arg0: i32, %arg1: i32) -> (i32, i32, i32) {
    %c0_i32 = arith.constant 0 : i32
    %c0_i32_0 = arith.constant 0 : i32
    %c0_i32_1 = arith.constant 0 : i32
    return %arg1, %c0_i32, %c0_i32_0 : i32, i32, i32
  }
  func.func @transform_3(%arg0: i32, %arg1: i32) -> (i32, i32, i32) {
    %c0_i32 = arith.constant 0 : i32
    %c0_i32_0 = arith.constant 0 : i32
    %c0_i32_1 = arith.constant 0 : i32
    return %arg1, %c0_i32, %c0_i32_0 : i32, i32, i32
  }
  func.func @transform_4(%arg0: i32, %arg1: i32) -> (i32, i32, i32) {
    %c0_i32 = arith.constant 0 : i32
    %c0_i32_0 = arith.constant 0 : i32
    %c0_i32_1 = arith.constant 0 : i32
    return %arg1, %c0_i32, %c0_i32_0 : i32, i32, i32
  }
  func.func @transform_5(%arg0: i32, %arg1: i32) -> (i32, i32, i32) {
    %c0_i32 = arith.constant 0 : i32
    %c0_i32_0 = arith.constant 0 : i32
    return %arg1, %arg0, %c0_i32 : i32, i32, i32
  }
}

</mosaic_0001>

<llo_original>
// kernel: tpu_custom_call.1
$region0: #{tpu_custom_call.1}
  #allocation0 [shape = 'u32[]', space=smem, size = 0x4, offset = 0x4, fixed_abs, tag = 'smem constant byte address 0x4 - core index']
  #allocation1 [shape = 'u32[144,128]{1,0:T(1,128)}', space=vmem, size = 0x12000, scoped, tag = 'internal scratch']
  %s0 = inlined_call_operand.vmem [shape: f32[16,32], index: 0, kind: input, shape index: {}]
  %s1 = inlined_call_operand.vmem [shape: bf16[3,32,4], index: 1, kind: input, shape index: {}]
  %s2 = inlined_call_operand.hbm [shape: bf16[3,4,32], index: 2, kind: input, shape index: {}]
  %s3 = inlined_call_operand.vmem [shape: bf16[3,32,32], index: 3, kind: input, shape index: {}]
  %s4 = inlined_call_operand.vmem [shape: f32[3,1,32], index: 4, kind: input, shape index: {}]
  %s5 = inlined_call_operand.hbm [shape: bf16[3,16,32], index: 5, kind: output, shape index: {}]
  %s6 = sld [smem:[#allocation0]]
  $region57: #{tpu_custom_call.1} parent=0
    _
  %s8 = ssub.s32 1, %s6
  %s9 = scalar_select 0, %s8, %s6
  $region1: #{tpu_custom_call.1} parent=0
    #allocation2 [shape = 'u8[2048]{0}', space=vmem, size = 0x800, scoped, tag = 'input window, operand 2']
    #allocation3 [shape = 's32[2]{0}', space=sflag, size = 0x8, scoped, tag = 'scoped memory for tpu_custom_call.1']
    #allocation4 [shape = 's32[2]{0}', space=sflag, size = 0x8, scoped, tag = 'scoped memory for tpu_custom_call.1']
    #allocation5 [shape = 'u8[8192]{0}', space=vmem, size = 0x2000, scoped, tag = 'output window, operand 0']
    %10 = vsyncpa [#allocation3], 0
    %s11 = scalar_lea.sflag [#allocation3], 1
    %12 = vsyncpa %s11, 0
    %13 = vsyncpa [#allocation4], 0
    %s14 = scalar_lea.sflag [#allocation4], 1
    %15 = vsyncpa %s14, 0
    loop: start=0, step=1, limit=5
    $region2: #{tpu_custom_call.1} parent=1 // loop_pre_header
      _
    $region3: #{tpu_custom_call.1} parent=1 // loop_header
      %s17 = sphi 0, %s21
      %p18 = scmp.ge.s32.totalorder %s17, 5
      %s24 = sphi 0, %s36
      %s25 = sphi 0, %s32
      %s26 = sphi 0, %s24
      %s27 = sphi 0, %s25
      %s28 = sphi 0, %s26
      %s29 = sphi 0, %s27
      %s39 = sphi 0, %s41
      %s42 = sphi 0, %s39
      %s43 = sphi 0, %s42
      %s59 = sphi 0, %s43
      %s65 = sphi 0, %s67
      %s68 = sphi 0, %s65
      %s69 = sphi 0, %s68
      %s85 = sphi 0, %s69
      %s91 = sphi 0, %s93
      %s94 = sphi 0, %s91
      %s95 = sphi 0, %s94
      %s111 = sphi 0, %s95
      %s117 = sphi 0, %s119
      %s120 = sphi 0, %s117
      %s121 = sphi 0, %s120
      %s137 = sphi 0, %s121
      %s143 = sphi 0, %s145
      %s146 = sphi 0, %s143
      %s147 = sphi 0, %s146
      %s163 = sphi 0, %s147
      %s171 = sphi 0, %s173
      %s174 = sphi 0, %s171
      %s175 = sphi 0, %s174
      %s191 = sphi 0, %s175
    $region4: #{tpu_custom_call.1} parent=1 // loop_header_branch
      %20 = sbr.rel (%p18) target = $region8
    $region5: #{tpu_custom_call.1} parent=1 // loop_body
      %s22 = ssub.s32 %s17, 1
      %s23 = ssub.s32 %s17, 2
      %s30 = sadd.s32 1, %s25
      %p31 = scmp.ge.s32.totalorder %s30, 3
      %s32 = scalar_select %p31, 0, %s30
      %s33 = sadd.s32 1, %s24
      %s34 = scalar_select %p31, %s33, %s24
      %p35 = scmp.ge.s32.totalorder %s34, 1
      %s36 = scalar_select %p35, 0, %s34
      %s37 = ssub.s32 %s24, %s36
      %p38 = scmp.eq.s32.totalorder %s37, 0
      %s40 = sadd.s32 %s39, 1
      %s41 = scalar_select %p38, %s39, %s40
      %p44 = pneg %p38
      %p45 = scmp.eq.s32.totalorder %s17, 2
      %p46 = por %p44, %p45
      %p47 = scmp.ne.s32.totalorder %s39, %s42
      %p48 = scmp.eq.s32.totalorder %s17, 0
      %p49 = por %p47, %p48
      %p50 = scmp.ne.s32.totalorder %s39, %s42
      %p51 = scmp.eq.s32.totalorder %s22, 2
      %p52 = por %p50, %p51
      %p53 = scmp.ne.s32.totalorder %s42, %s43
      %p54 = scmp.eq.s32.totalorder %s22, 0
      %p55 = por %p53, %p54
      %p56 = scmp.ne.s32.totalorder %s42, %s43
      %p57 = scmp.eq.s32.totalorder %s23, 2
      %p58 = por %p56, %p57
      %p60 = scmp.ne.s32.totalorder %s43, %s59
      %p61 = scmp.eq.s32.totalorder %s23, 0
      %p62 = por %p60, %p61
      %s63 = ssub.s32 %s25, %s32
      %p64 = scmp.eq.s32.totalorder %s63, 0
      %s66 = sadd.s32 %s65, 1
      %s67 = scalar_select %p64, %s65, %s66
      %p70 = pneg %p64
      %p71 = scmp.eq.s32.totalorder %s17, 2
      %p72 = por %p70, %p71
      %p73 = scmp.ne.s32.totalorder %s65, %s68
      %p74 = scmp.eq.s32.totalorder %s17, 0
      %p75 = por %p73, %p74
      %p76 = scmp.ne.s32.totalorder %s65, %s68
      %p77 = scmp.eq.s32.totalorder %s22, 2
      %p78 = por %p76, %p77
      %p79 = scmp.ne.s32.totalorder %s68, %s69
      %p80 = scmp.eq.s32.totalorder %s22, 0
      %p81 = por %p79, %p80
      %p82 = scmp.ne.s32.totalorder %s68, %s69
      %p83 = scmp.eq.s32.totalorder %s23, 2
      %p84 = por %p82, %p83
      %p86 = scmp.ne.s32.totalorder %s69, %s85
      %p87 = scmp.eq.s32.totalorder %s23, 0
      %p88 = por %p86, %p87
      %s89 = ssub.s32 %s25, %s32
      %p90 = scmp.eq.s32.totalorder %s89, 0
      %s92 = sadd.s32 %s91, 1
      %s93 = scalar_select %p90, %s91, %s92
      %p96 = pneg %p90
      %p97 = scmp.eq.s32.totalorder %s17, 2
      %p98 = por %p96, %p97
      %p99 = scmp.ne.s32.totalorder %s91, %s94
      %p100 = scmp.eq.s32.totalorder %s17, 0
      %p101 = por %p99, %p100
      %p102 = scmp.ne.s32.totalorder %s91, %s94
      %p103 = scmp.eq.s32.totalorder %s22, 2
      %p104 = por %p102, %p103
      %p105 = scmp.ne.s32.totalorder %s94, %s95
      %p106 = scmp.eq.s32.totalorder %s22, 0
      %p107 = por %p105, %p106
      %p108 = scmp.ne.s32.totalorder %s94, %s95
      %p109 = scmp.eq.s32.totalorder %s23, 2
      %p110 = por %p108, %p109
      %p112 = scmp.ne.s32.totalorder %s95, %s111
      %p113 = scmp.eq.s32.totalorder %s23, 0
      %p114 = por %p112, %p113
      %s115 = ssub.s32 %s25, %s32
      %p116 = scmp.eq.s32.totalorder %s115, 0
      %s118 = sadd.s32 %s117, 1
      %s119 = scalar_select %p116, %s117, %s118
      %p122 = pneg %p116
      %p123 = scmp.eq.s32.totalorder %s17, 2
      %p124 = por %p122, %p123
      %p125 = scmp.ne.s32.totalorder %s117, %s120
      %p126 = scmp.eq.s32.totalorder %s17, 0
      %p127 = por %p125, %p126
      %p128 = scmp.ne.s32.totalorder %s117, %s120
      %p129 = scmp.eq.s32.totalorder %s22, 2
      %p130 = por %p128, %p129
      %p131 = scmp.ne.s32.totalorder %s120, %s121
      %p132 = scmp.eq.s32.totalorder %s22, 0
      %p133 = por %p131, %p132
      %p134 = scmp.ne.s32.totalorder %s120, %s121
      %p135 = scmp.eq.s32.totalorder %s23, 2
      %p136 = por %p134, %p135
      %p138 = scmp.ne.s32.totalorder %s121, %s137
      %p139 = scmp.eq.s32.totalorder %s23, 0
      %p140 = por %p138, %p139
      %s141 = ssub.s32 %s25, %s32
      %p142 = scmp.eq.s32.totalorder %s141, 0
      %s144 = sadd.s32 %s143, 1
      %s145 = scalar_select %p142, %s143, %s144
      %p148 = pneg %p142
      %p149 = scmp.eq.s32.totalorder %s17, 2
      %p150 = por %p148, %p149
      %p151 = scmp.ne.s32.totalorder %s143, %s146
      %p152 = scmp.eq.s32.totalorder %s17, 0
      %p153 = por %p151, %p152
      %p154 = scmp.ne.s32.totalorder %s143, %s146
      %p155 = scmp.eq.s32.totalorder %s22, 2
      %p156 = por %p154, %p155
      %p157 = scmp.ne.s32.totalorder %s146, %s147
      %p158 = scmp.eq.s32.totalorder %s22, 0
      %p159 = por %p157, %p158
      %p160 = scmp.ne.s32.totalorder %s146, %s147
      %p161 = scmp.eq.s32.totalorder %s23, 2
      %p162 = por %p160, %p161
      %p164 = scmp.ne.s32.totalorder %s147, %s163
      %p165 = scmp.eq.s32.totalorder %s23, 0
      %p166 = por %p164, %p165
      %s167 = ssub.s32 %s25, %s32
      %s168 = ssub.s32 %s24, %s36
      %s169 = sor.u32 %s167, %s168
      %p170 = scmp.eq.s32.totalorder %s169, 0
      %s172 = sadd.s32 %s171, 1
      %s173 = scalar_select %p170, %s171, %s172
      %p176 = pneg %p170
      %p177 = scmp.eq.s32.totalorder %s17, 2
      %p178 = por %p176, %p177
      %p179 = scmp.ne.s32.totalorder %s171, %s174
      %p180 = scmp.eq.s32.totalorder %s17, 0
      %p181 = por %p179, %p180
      %p182 = scmp.ne.s32.totalorder %s171, %s174
      %p183 = scmp.eq.s32.totalorder %s22, 2
      %p184 = por %p182, %p183
      %p185 = scmp.ne.s32.totalorder %s174, %s175
      %p186 = scmp.eq.s32.totalorder %s22, 0
      %p187 = por %p185, %p186
      %p188 = scmp.ne.s32.totalorder %s174, %s175
      %p189 = scmp.eq.s32.totalorder %s23, 2
      %p190 = por %p188, %p189
      %p192 = scmp.ne.s32.totalorder %s175, %s191
      %p193 = scmp.eq.s32.totalorder %s23, 0
      %p194 = por %p192, %p193
      %p195 = scmp.le.s32.totalorder 1, %s17
      %p196 = scmp.lt.s32.totalorder %s17, 4
      %p197 = pnand %p195, %p196
      %p198 = pneg %p197
      // Predicated region
      $region9: #{tpu_custom_call.1} parent=5 // pred_check
        _
      $region10: #{tpu_custom_call.1} parent=5 // pred_check_branch
        %200 = sbr.rel (%p197) target = $region12
      $region11: #{tpu_custom_call.1} parent=5 // pred_region
        %s201 = ssub.s32 %s17, 1
        // Predicated region
        $region13: #{tpu_custom_call.1} parent=11 // pred_check
          %p202 = pneg %p55
        $region14: #{tpu_custom_call.1} parent=11 // pred_check_branch
          %204 = sbr.rel (%p202) target = $region16
        $region15: #{tpu_custom_call.1} parent=11 // pred_region
          %s205 = smul.u32 2, %s26
          %p206 = scmp.lt.s32.totalorder %s205, 1
          %s207 = scalar_select %p206, %s205, 1
          %s208 = smul.addr %s207, 8
          %s209 = scalar_lea.vmem %s0, %s208
          %s210 = smul.u32 2, %s26
        $region16: #{tpu_custom_call.1} parent=11 // pred_fallthru
          _
      $region12: #{tpu_custom_call.1} parent=5 // pred_fallthru
        _
      %p211 = scmp.lt.s32.totalorder %s17, 3
      // Predicated region
      $region17: #{tpu_custom_call.1} parent=5 // pred_check
        %p212 = pneg %p211
      $region18: #{tpu_custom_call.1} parent=5 // pred_check_branch
        %214 = sbr.rel (%p212) target = $region20
      $region19: #{tpu_custom_call.1} parent=5 // pred_region
        // Predicated region
        $region21: #{tpu_custom_call.1} parent=19 // pred_check
          %p215 = pneg %p75
        $region22: #{tpu_custom_call.1} parent=19 // pred_check_branch
          %217 = sbr.rel (%p215) target = $region24
        $region23: #{tpu_custom_call.1} parent=19 // pred_region
          %p218 = scmp.lt.s32.totalorder %s25, 2
          %s219 = scalar_select %p218, %s25, 2
          %s220 = smul.addr %s219, 4
          %s221 = smul.addr %s220, 4
          %s222 = scalar_lea.vmem %s1, %s221
        $region24: #{tpu_custom_call.1} parent=19 // pred_fallthru
          _
        // Predicated region
        $region25: #{tpu_custom_call.1} parent=19 // pred_check
          %p223 = pneg %p101
        $region26: #{tpu_custom_call.1} parent=19 // pred_check_branch
          %225 = sbr.rel (%p223) target = $region28
        $region27: #{tpu_custom_call.1} parent=19 // pred_region
          %s226 = sand.u32 %s91, 1
          %s227 = scalar_lea.sflag [#allocation3], %s226
          %s228 = sand.u32 %s91, 1
          %s229 = smul.addr %s228, 2
          %s230 = scalar_lea.vmem [#allocation2], %s229
          %s232 = ssub.s32 32, 32
          %233 = vsyncadd %s227, %s232
          %s234 = smul.addr %s25, 32
          %s235 = scalar_lea.hbm %s2, %s234
          %s237 = sshll.u32 %s230, 4
          %s238 = int_to_ptr.vmem [resolvable:$true] %s237
          %240 = dma.hbm_to_vmem [thread:$0]  %s235, 32, %s238, %s227
        $region28: #{tpu_custom_call.1} parent=19 // pred_fallthru
          _
        // Predicated region
        $region29: #{tpu_custom_call.1} parent=19 // pred_check
          %p241 = pneg %p127
        $region30: #{tpu_custom_call.1} parent=19 // pred_check_branch
          %243 = sbr.rel (%p241) target = $region32
        $region31: #{tpu_custom_call.1} parent=19 // pred_region
          %p244 = scmp.lt.s32.totalorder %s25, 2
          %s245 = scalar_select %p244, %s25, 2
          %s246 = smul.addr %s245, 4
          %s247 = smul.addr %s246, 4
          %s248 = scalar_lea.vmem %s3, %s247
        $region32: #{tpu_custom_call.1} parent=19 // pred_fallthru
          _
        // Predicated region
        $region33: #{tpu_custom_call.1} parent=19 // pred_check
          %p249 = pneg %p153
        $region34: #{tpu_custom_call.1} parent=19 // pred_check_branch
          %251 = sbr.rel (%p249) target = $region36
        $region35: #{tpu_custom_call.1} parent=19 // pred_region
          %p252 = scmp.lt.s32.totalorder %s25, 2
          %s253 = scalar_select %p252, %s25, 2
          %s254 = scalar_lea.vmem %s4, %s253
        $region36: #{tpu_custom_call.1} parent=19 // pred_fallthru
          _
      $region20: #{tpu_custom_call.1} parent=5 // pred_fallthru
        _
      %p255 = scmp.le.s32.totalorder 1, %s17
      %p256 = scmp.lt.s32.totalorder %s17, 4
      %p257 = pnand %p255, %p256
      %p258 = pneg %p257
      // Predicated region
      $region37: #{tpu_custom_call.1} parent=5 // pred_check
        _
      $region38: #{tpu_custom_call.1} parent=5 // pred_check_branch
        %260 = sbr.rel (%p257) target = $region40
      $region39: #{tpu_custom_call.1} parent=5 // pred_region
        %s261 = ssub.s32 %s17, 1
        %s262 = sand.u32 %s94, 1
        %s263 = scalar_lea.sflag [#allocation3], %s262
        %s264 = sand.u32 %s94, 1
        %s265 = smul.addr %s264, 2
        %s266 = scalar_lea.vmem [#allocation2], %s265
        // Predicated region
        $region41: #{tpu_custom_call.1} parent=39 // pred_check
          %p267 = pneg %p107
        $region42: #{tpu_custom_call.1} parent=39 // pred_check_branch
          %269 = sbr.rel (%p267) target = $region44
        $region43: #{tpu_custom_call.1} parent=39 // pred_region
          %270 = dma.done %s263, 32
        $region44: #{tpu_custom_call.1} parent=39 // pred_fallthru
          _
        %s271 = smul.u32 2, %s26
        %p272 = scmp.lt.s32.totalorder %s271, 1
        %s273 = scalar_select %p272, %s271, 1
        %s274 = smul.addr %s273, 8
        %s275 = scalar_lea.vmem %s0, %s274
        %p276 = pneg %p55
        %p277 = pneg %p52
        %p278 = scmp.lt.s32.totalorder %s27, 2
        %s279 = scalar_select %p278, %s27, 2
        %s280 = smul.addr %s279, 4
        %s281 = smul.addr %s280, 4
        %s282 = scalar_lea.vmem %s1, %s281
        %p283 = pneg %p81
        %p284 = pneg %p78
        %s285 = sand.u32 %s94, 1
        %s286 = scalar_lea.sflag [#allocation3], %s285
        %s287 = sand.u32 %s94, 1
        %s288 = smul.addr %s287, 2
        %s289 = scalar_lea.vmem [#allocation2], %s288
        %p290 = pneg %p107
        %p291 = pneg %p104
        %p292 = scmp.lt.s32.totalorder %s27, 2
        %s293 = scalar_select %p292, %s27, 2
        %s294 = smul.addr %s293, 4
        %s295 = smul.addr %s294, 4
        %s296 = scalar_lea.vmem %s3, %s295
        %p297 = pneg %p133
        %p298 = pneg %p130
        %p299 = scmp.lt.s32.totalorder %s27, 2
        %s300 = scalar_select %p299, %s27, 2
        %s301 = scalar_lea.vmem %s4, %s300
        %p302 = pneg %p159
        %p303 = pneg %p156
        %p304 = pneg %p187
        %p305 = pneg %p184
        %s306 = sand.u32 %s174, 1
        %s307 = scalar_lea.sflag [#allocation4], %s306
        %s308 = sand.u32 %s174, 1
        %s309 = smul.addr %s308, 8
        %s310 = scalar_lea.vmem [#allocation5], %s309
        %s311 = smul.u32 2, %s26
        %p312 = scmp.lt.s32.totalorder %s311, 1
        %s313 = scalar_select %p312, %s311, 1
        %s314 = smul.addr %s313, 8
        %s315 = scalar_lea.vmem %s0, %s314
        %s316 = smul.u32 2, %s26
        %p317 = scmp.lt.s32.totalorder %s27, 2
        %s318 = scalar_select %p317, %s27, 2
        %s319 = smul.addr %s318, 4
        %s320 = smul.addr %s319, 4
        %s321 = scalar_lea.vmem %s1, %s320
        %p322 = scmp.lt.s32.totalorder %s27, 2
        %s323 = scalar_select %p322, %s27, 2
        %s324 = smul.addr %s323, 4
        %s325 = smul.addr %s324, 4
        %s326 = scalar_lea.vmem %s3, %s325
        %p327 = scmp.lt.s32.totalorder %s27, 2
        %s328 = scalar_select %p327, %s27, 2
        %s329 = scalar_lea.vmem %s4, %s328
        %s330 = smul.u32 2, %s26
        %v332 = vld [vmem:[%s315] sm:$0xff]
        %v333 = vld [vmem:[%s315 + $0x8] sm:$0xff]
        %v334 = vpack.c.bf16 %v333, %v332
        %v335 = vld [vmem:[%s321] sm:$0xf]
        %v336 = vld [vmem:[%s321 + $0x4] sm:$0xf]
        %v337 = vld [vmem:[%s321 + $0x8] sm:$0xf]
        %v338 = vld [vmem:[%s321 + $0xc] sm:$0xf]
        %v343 = vunpack.c.l.b16 %v335
        %v344 = vunpack.c.l.b16 %v336
        %v345 = vunpack.c.l.b16 %v337
        %v346 = vunpack.c.l.b16 %v338
        %v347 = vpack.c.b16 %v344, %v343
        %v348 = vpack.c.b16 %v346, %v345
        %vm351 = vcmask 261120
        %v353 = vsel %vm351, %v334, 0
        %355 = vmatprep.subr.bf16.mxu0 0
        %356 = vmatpush1.bf16.msra.mxu0 %v347
        %357 = vmatprep.subr.bf16.mxu0 0
        %358 = vmatpush1.bf16.msra.mxu0 %v348
        %359 = vmatprep.subr.bf16.mxu0 0
        %360 = vmatpush1.bf16.msra.mxu0 0
        %361 = vmatprep.subr.bf16.mxu0 0
        %362 = vmatpush1.bf16.msra.mxu0 0
        %363 = vmatprep.subr.bf16.mxu0 0
        %364 = vmatpush1.bf16.msra.mxu0 0
        %365 = vmatprep.subr.bf16.mxu0 0
        %366 = vmatpush1.bf16.msra.mxu0 0
        %367 = vmatprep.subr.bf16.mxu0 0
        %368 = vmatpush1.bf16.msra.mxu0 0
        %369 = vmatprep.subr.bf16.mxu0 0
        %370 = vmatpush1.bf16.msra.mxu0 0
        %371 = vmatprep.subr.bf16.mxu0 0
        %372 = vmatpush1.bf16.msra.mxu0 0
        %373 = vmatprep.subr.bf16.mxu0 0
        %374 = vmatpush1.bf16.msra.mxu0 0
        %375 = vmatprep.subr.bf16.mxu0 0
        %376 = vmatpush1.bf16.msra.mxu0 0
        %377 = vmatprep.subr.bf16.mxu0 0
        %378 = vmatpush1.bf16.msra.mxu0 0
        %379 = vmatprep.subr.bf16.mxu0 0
        %380 = vmatpush1.bf16.msra.mxu0 0
        %381 = vmatprep.subr.bf16.mxu0 0
        %382 = vmatpush1.bf16.msra.mxu0 0
        %383 = vmatprep.subr.bf16.mxu0 0
        %384 = vmatpush1.bf16.msra.mxu0 0
        %385 = vmatprep.subr.bf16.mxu0 0
        %386 = vmatpush1.bf16.msra.mxu0 0
        %387 = vmatprep.mubr.bf16.mxu0 0
        %388 = vmatmul.mubr.bf16.gmra.mrb[0].mxu0 %v353
        %v389 = vpop.f32.mrb[0].mxu0
        %v390 = vadd.f32 0.0, %v389
        %v391 = vpop.f32.mrb[0].mxu0
        %v392 = vpop.f32.mrb[0].mxu0
        %v393 = vadd.f32 0.0, %v392
        %v394 = vpop.f32.mrb[0].mxu0
        %395 = vdwg.mxu0
        %v396 = vpack.c.bf16 %v393, %v390
        %v397 = vld [vmem:[%s266] sm:$0x3]
        %vm398 = vcmask 31744
        %v400 = vsel %vm398, %v396, 0
        %vm402 = vcmask 1041408
        %v404 = vsel %vm402, %v397, 0
        %406 = vmatprep.subr.bf16.mxu0 0
        %407 = vmatpush1.bf16.msra.mxu0 %v404
        %408 = vmatprep.subr.bf16.mxu0 0
        %409 = vmatpush1.bf16.msra.mxu0 0
        %410 = vmatprep.subr.bf16.mxu0 0
        %411 = vmatpush1.bf16.msra.mxu0 0
        %412 = vmatprep.subr.bf16.mxu0 0
        %413 = vmatpush1.bf16.msra.mxu0 0
        %414 = vmatprep.subr.bf16.mxu0 0
        %415 = vmatpush1.bf16.msra.mxu0 0
        %416 = vmatprep.subr.bf16.mxu0 0
        %417 = vmatpush1.bf16.msra.mxu0 0
        %418 = vmatprep.subr.bf16.mxu0 0
        %419 = vmatpush1.bf16.msra.mxu0 0
        %420 = vmatprep.subr.bf16.mxu0 0
        %421 = vmatpush1.bf16.msra.mxu0 0
        %422 = vmatprep.subr.bf16.mxu0 0
        %423 = vmatpush1.bf16.msra.mxu0 0
        %424 = vmatprep.subr.bf16.mxu0 0
        %425 = vmatpush1.bf16.msra.mxu0 0
        %426 = vmatprep.subr.bf16.mxu0 0
        %427 = vmatpush1.bf16.msra.mxu0 0
        %428 = vmatprep.subr.bf16.mxu0 0
        %429 = vmatpush1.bf16.msra.mxu0 0
        %430 = vmatprep.subr.bf16.mxu0 0
        %431 = vmatpush1.bf16.msra.mxu0 0
        %432 = vmatprep.subr.bf16.mxu0 0
        %433 = vmatpush1.bf16.msra.mxu0 0
        %434 = vmatprep.subr.bf16.mxu0 0
        %435 = vmatpush1.bf16.msra.mxu0 0
        %436 = vmatprep.subr.bf16.mxu0 0
        %437 = vmatpush1.bf16.msra.mxu0 0
        %438 = vmatprep.mubr.bf16.mxu0 0
        %439 = vmatmul.mubr.bf16.gmra.mrb[0].mxu0 %v400
        %v440 = vpop.f32.mrb[0].mxu0
        %v441 = vadd.f32 0.0, %v440
        %v442 = vpop.f32.mrb[0].mxu0
        %v443 = vpop.f32.mrb[0].mxu0
        %v444 = vadd.f32 0.0, %v443
        %v445 = vpop.f32.mrb[0].mxu0
        %446 = vdwg.mxu0
        %v447 = vadd.f32 %v332, %v441
        %v448 = vadd.f32 %v333, %v444
        %v449 = vpack.c.bf16 %v448, %v447
        %v450 = vld [vmem:[%s326] sm:$0xf]
        %v451 = vld [vmem:[%s326 + $0x4] sm:$0xf]
        %v452 = vld [vmem:[%s326 + $0x8] sm:$0xf]
        %v453 = vld [vmem:[%s326 + $0xc] sm:$0xf]
        %v454 = vld [vmem:[%s329] sm:$0x1]
        %v456 = vlaneseq
        %v457 = vshrl.u32 %v456, 7
        %v458 = vsub.s32 0, %v457
        %v459 = vrot.slane %v454, %v458
        %v465 = vunpack.c.l.b16 %v450
        %v466 = vunpack.c.l.b16 %v451
        %v467 = vunpack.c.l.b16 %v452
        %v468 = vunpack.c.l.b16 %v453
        %v469 = vpack.c.b16 %v466, %v465
        %v470 = vpack.c.b16 %v468, %v467
        %v474 = vsel %vm351, %v449, 0
        %476 = vmatprep.subr.bf16.mxu0 0
        %477 = vmatpush1.bf16.msra.mxu0 %v469
        %478 = vmatprep.subr.bf16.mxu0 0
        %479 = vmatpush1.bf16.msra.mxu0 %v470
        %480 = vmatprep.subr.bf16.mxu0 0
        %481 = vmatpush1.bf16.msra.mxu0 0
        %482 = vmatprep.subr.bf16.mxu0 0
        %483 = vmatpush1.bf16.msra.mxu0 0
        %484 = vmatprep.subr.bf16.mxu0 0
        %485 = vmatpush1.bf16.msra.mxu0 0
        %486 = vmatprep.subr.bf16.mxu0 0
        %487 = vmatpush1.bf16.msra.mxu0 0
        %488 = vmatprep.subr.bf16.mxu0 0
        %489 = vmatpush1.bf16.msra.mxu0 0
        %490 = vmatprep.subr.bf16.mxu0 0
        %491 = vmatpush1.bf16.msra.mxu0 0
        %492 = vmatprep.subr.bf16.mxu0 0
        %493 = vmatpush1.bf16.msra.mxu0 0
        %494 = vmatprep.subr.bf16.mxu0 0
        %495 = vmatpush1.bf16.msra.mxu0 0
        %496 = vmatprep.subr.bf16.mxu0 0
        %497 = vmatpush1.bf16.msra.mxu0 0
        %498 = vmatprep.subr.bf16.mxu0 0
        %499 = vmatpush1.bf16.msra.mxu0 0
        %500 = vmatprep.subr.bf16.mxu0 0
        %501 = vmatpush1.bf16.msra.mxu0 0
        %502 = vmatprep.subr.bf16.mxu0 0
        %503 = vmatpush1.bf16.msra.mxu0 0
        %504 = vmatprep.subr.bf16.mxu0 0
        %505 = vmatpush1.bf16.msra.mxu0 0
        %506 = vmatprep.subr.bf16.mxu0 0
        %507 = vmatpush1.bf16.msra.mxu0 0
        %508 = vmatprep.mubr.bf16.mxu0 0
        %509 = vmatmul.mubr.bf16.gmra.mrb[0].mxu0 %v474
        %v510 = vpop.f32.mrb[0].mxu0
        %v511 = vadd.f32 %v459, %v510
        %v512 = vpop.f32.mrb[0].mxu0
        %v513 = vpop.f32.mrb[0].mxu0
        %v514 = vadd.f32 %v459, %v513
        %v515 = vpop.f32.mrb[0].mxu0
        %516 = vdwg.mxu0
        %v517 = vpack.c.bf16 %v514, %v511
        %v519 = vunpack.c.l.b16 %v517
        %v520 = vunpack.c.h.b16 %v517
        %v521 = vpack.c.b16 %v519, %v519
        %v522 = vpack.c.b16 %v520, %v520
        %vm525 = vcmask 257024
        %526 = vst.msk [vmem:[%s310] sm:$0xf] %vm525, %v521
        %527 = vst.msk [vmem:[%s310 + $0x4] sm:$0xf] %vm525, %v522
        %s528 = sand.u32 %s174, 1
        %s529 = scalar_lea.sflag [#allocation4], %s528
        %s530 = sand.u32 %s174, 1
        %s531 = smul.addr %s530, 8
        %s532 = scalar_lea.vmem [#allocation5], %s531
        // Predicated region
        $region45: #{tpu_custom_call.1} parent=39 // pred_check
          %p533 = pneg %p184
        $region46: #{tpu_custom_call.1} parent=39 // pred_check_branch
          %535 = sbr.rel (%p533) target = $region48
        $region47: #{tpu_custom_call.1} parent=39 // pred_region
          %s536 = smul.u32 2, %s26
          %s538 = ssub.s32 128, 128
          %539 = vsyncadd %s529, %s538
          %s540 = smul.addr %s27, 2
          %s541 = sadd.s32 %s536, %s540
          %s542 = smul.addr %s541, 64
          %s543 = scalar_lea.hbm %s5, %s542
          %s544 = sshll.u32 %s532, 4
          %s545 = int_to_ptr.vmem [resolvable:$true] %s544
          %550 = dma.vmem_to_hbm [thread:$0]  %s545, 128, %s543, %s529, 64, 64, 4
        $region48: #{tpu_custom_call.1} parent=39 // pred_fallthru
          _
      $region40: #{tpu_custom_call.1} parent=5 // pred_fallthru
        _
      %p551 = scmp.le.s32.totalorder 2, %s17
      // Predicated region
      $region49: #{tpu_custom_call.1} parent=5 // pred_check
        %p552 = pneg %p551
      $region50: #{tpu_custom_call.1} parent=5 // pred_check_branch
        %554 = sbr.rel (%p552) target = $region52
      $region51: #{tpu_custom_call.1} parent=5 // pred_region
        %s555 = ssub.s32 %s17, 2
        // Predicated region
        $region53: #{tpu_custom_call.1} parent=51 // pred_check
          %p556 = pneg %p190
        $region54: #{tpu_custom_call.1} parent=51 // pred_check_branch
          %558 = sbr.rel (%p556) target = $region56
        $region55: #{tpu_custom_call.1} parent=51 // pred_region
          %s559 = sand.u32 %s175, 1
          %s560 = scalar_lea.sflag [#allocation4], %s559
          %s561 = sand.u32 %s175, 1
          %s562 = smul.addr %s561, 8
          %s563 = scalar_lea.vmem [#allocation5], %s562
          %564 = dma.done %s560, 128
        $region56: #{tpu_custom_call.1} parent=51 // pred_fallthru
          _
      $region52: #{tpu_custom_call.1} parent=5 // pred_fallthru
        _
    $region6: #{tpu_custom_call.1} parent=1 // loop_footer
      %s21 = sadd.s32 1, %s17
    $region7: #{tpu_custom_call.1} parent=1 // loop_footer_branch
      %16 = sbr.rel target = $region3
    $region8: #{tpu_custom_call.1} parent=1 // loop_exit
      _
    %565 = vsyncpa [#allocation3], 1
    %s566 = scalar_lea.sflag [#allocation3], 1
    %567 = vsyncpa %s566, 1
    %568 = vsyncpa [#allocation4], 1
    %s569 = scalar_lea.sflag [#allocation4], 1
    %570 = vsyncpa %s569, 1

</llo_original>
